<compile_context>
chip_gen: v7x
topology: tpu7x:2x2x1
jax: 0.10.0
libtpu: 0.0.40
codegen_flags: <defaults>
</compile_context>

<pallas_src>
import functools

import jax
import jax.numpy as jnp
from jax import lax
from jax.experimental import pallas as pl
from jax.experimental.pallas import tpu as pltpu

DIM = 16            # channels
L = 128             # per-sample sequence length
N = 4               # batch
K = 3               # Conv1d kernel_size
DILATIONS = (1, 3)
NEG_SLOPE = 0.2     # LeakyReLU slope

assert K % 2 == 1, "center-tap layout assumes odd kernel size"
assert all(((K - 1) * d) % 2 == 0 for d in DILATIONS), "need symmetric 'same' pad"
# roll+mask conv is only valid while every tap offset stays inside one sample.
assert all((K - 1) * d // 2 < L for d in DILATIONS), "dilation too large for L"


def _leaky_relu(x):
    return jnp.where(x > 0, x, NEG_SLOPE * x)


def _dilated_conv_same(h, w_ref, b_ref, dilation, pos):
    """h: (NB, C, L) f32.  w_ref: (C, K*C) f32 stacked taps.  b_ref: (C, 1) f32.

    Activation-side im2col: roll+mask h once per non-center tap (XLU + one VPU
    compare/select), stack the K copies along the contraction axis and feed a
    single batched MXU matmul with 48-deep contraction; bias added on top.
    """
    nb, c, length = h.shape
    pad = (K - 1) * dilation // 2
    cols = []
    for k in range(K):
        off = k * dilation - pad                      # static: -d, 0, +d
        if off == 0:
            cols.append(h)
            continue
        rolled = pltpu.roll(h, shift=(-off) % length, axis=2)
        if off < 0:
            valid = pos >= -off                       # single compare per tap
        else:
            valid = pos < length - off
        cols.append(jnp.where(valid, rolled, 0.0))
    h_cols = jnp.concatenate(cols, axis=1)            # (NB, K*C, L)
    w_b = jnp.broadcast_to(w_ref[...][None], (nb,) + w_ref.shape)
    y = jnp.einsum('nok,nkl->nol', w_b, h_cols,
                   preferred_element_type=jnp.float32)  # (NB, C, L)
    return y + b_ref[...][None, :, :]


def residual_layer_kernel(x_ref, w1_ref, b1_ref, w2_ref, b2_ref, o_ref):
    x = x_ref[...].astype(jnp.float32)                # (NB, C, L)
    # One (1,1,L) position row per grid step; broadcast along batch/channels.
    pos = lax.broadcasted_iota(jnp.int32, (1, 1, x.shape[2]), 2)
    h = _leaky_relu(x)
    h = _dilated_conv_same(h, w1_ref, b1_ref, DILATIONS[0], pos)
    h = _leaky_relu(h)
    h = _dilated_conv_same(h, w2_ref, b2_ref, DILATIONS[1], pos)
    o_ref[...] = (h + x).astype(o_ref.dtype)          # residual add


@functools.partial(jax.jit, static_argnames="nb")
def residual_layer(x, w1, b1, w2, b2, nb=None):
    n, c, length = x.shape
    if nb is None:
        # grid=(1,): whole batch per step.  Best for single-TC v5e/v6e.
        # For v7x, pass nb=n//2 and use (pltpu.CORE_PARALLEL,) below to split
        # the batch across both TensorCores.
        nb = n
    assert n % nb == 0 and c == DIM and length == L

    # Stack the K taps along the contraction axis: w_stacked[o, k*C + i] = w[k, o, i].
    w1s = jnp.transpose(w1, (1, 0, 2)).reshape(c, K * c)
    w2s = jnp.transpose(w2, (1, 0, 2)).reshape(c, K * c)

    def const_spec(shape):
        # Constant index_map -> weight/bias tiles stay VMEM-resident across steps.
        return pl.BlockSpec(shape, lambda i: (0,) * len(shape))

    return pl.pallas_call(
        residual_layer_kernel,
        out_shape=jax.ShapeDtypeStruct(x.shape, x.dtype),
        grid_spec=pl.GridSpec(
            grid=(n // nb,),
            in_specs=[
                pl.BlockSpec((nb, c, length), lambda i: (i, 0, 0)),   # x slab
                const_spec(w1s.shape),
                const_spec(b1.shape),
                const_spec(w2s.shape),
                const_spec(b2.shape),
            ],
            out_specs=pl.BlockSpec((nb, c, length), lambda i: (i, 0, 0)),
        ),
        compiler_params=pltpu.CompilerParams(
            dimension_semantics=("arbitrary",)),
    )(x, w1s, b1, w2s, b2)


def _reference(x, w1, b1, w2, b2):
    # Pure-JAX reference mirroring torch Conv1d semantics (full f32).
    def conv(h, w, b, d):
        pad = (K - 1) * d // 2
        w_oik = jnp.transpose(w, (1, 2, 0))  # (K,O,I) -> (O,I,K)
        y = lax.conv_general_dilated(
            h, w_oik, window_strides=(1,), padding=[(pad, pad)],
            rhs_dilation=(d,), dimension_numbers=("NCH", "OIH", "NCH"))
        return y + b[None, :, :]
    h = jnp.where(x > 0, x, NEG_SLOPE * x)
    h = conv(h, w1, b1, DILATIONS[0])
    h = jnp.where(h > 0, h, NEG_SLOPE * h)
    h = conv(h, w2, b2, DILATIONS[1])
    return h + x


if __name__ == "__main__":
    key = jax.random.PRNGKey(0)
    kx, k1, kb1, k2, kb2 = jax.random.split(key, 5)

    x = jax.random.normal(kx, (N, DIM, L), jnp.float32)

    # Deterministic synthetic params, PyTorch-default-style uniform init.
    bound = 1.0 / (DIM * K) ** 0.5
    w1 = jax.random.uniform(k1, (K, DIM, DIM), jnp.float32, -bound, bound)
    b1 = jax.random.uniform(kb1, (DIM, 1), jnp.float32, -bound, bound)
    w2 = jax.random.uniform(k2, (K, DIM, DIM), jnp.float32, -bound, bound)
    b2 = jax.random.uniform(kb2, (DIM, 1), jnp.float32, -bound, bound)

    out = jax.block_until_ready(residual_layer(x, w1, b1, w2, b2))

    ref = _reference(x, w1, b1, w2, b2)
    assert out.shape == x.shape and out.dtype == x.dtype
    max_err = float(jnp.max(jnp.abs(out - ref)))
    assert jnp.allclose(out, ref, atol=1e-2, rtol=1e-2), max_err

    print("KERNEL_OK")
</pallas_src>

<mosaic_0001>
module attributes {stable_mosaic.version = 11 : i64} {
  func.func @residual_layer_kernel(%arg0: i32, %arg1: memref<4x16x128xf32, #tpu.memory_space<vmem>>, %arg2: memref<16x48xf32, #tpu.memory_space<vmem>>, %arg3: memref<16x1xf32, #tpu.memory_space<vmem>>, %arg4: memref<16x48xf32, #tpu.memory_space<vmem>>, %arg5: memref<16x1xf32, #tpu.memory_space<vmem>>, %arg6: memref<4x16x128xf32, #tpu.memory_space<vmem>>) attributes {dimension_semantics = [#tpu.dimension_semantics<arbitrary>], iteration_bounds = array<i64: 1>, scalar_prefetch = 0 : i64, scratch_operands = 0 : i64, tpu.core_type = #tpu.core_type<tc>, window_params = [{transform_indices = @transform_0, window_bounds = array<i64: 4, 16, 128>}, {pipeline_mode = #tpu.pipeline_mode<synchronous>, transform_indices = @transform_1, window_bounds = array<i64: 16, 48>}, {pipeline_mode = #tpu.pipeline_mode<synchronous>, transform_indices = @transform_2, window_bounds = array<i64: 16, 1>}, {pipeline_mode = #tpu.pipeline_mode<synchronous>, transform_indices = @transform_3, window_bounds = array<i64: 16, 48>}, {pipeline_mode = #tpu.pipeline_mode<synchronous>, transform_indices = @transform_4, window_bounds = array<i64: 16, 1>}, {transform_indices = @transform_5, window_bounds = array<i64: 4, 16, 128>}]} {
    %c0 = arith.constant 0 : index
    %c0_0 = arith.constant 0 : index
    %c0_1 = arith.constant 0 : index
    %0 = vector.load %arg1[%c0, %c0_0, %c0_1] : memref<4x16x128xf32, #tpu.memory_space<vmem>>, vector<4x16x128xf32>
    %1 = tpu.iota {dimensions = array<i32: 2>} : vector<1x1x128xi32>
    %cst = arith.constant 0.000000e+00 : f32
    %2 = vector.broadcast %cst : f32 to vector<4x16x128xf32>
    %3 = arith.cmpf ogt, %0, %2 : vector<4x16x128xf32>
    %cst_2 = arith.constant 2.000000e-01 : f32
    %4 = vector.broadcast %cst_2 : f32 to vector<4x16x128xf32>
    %5 = arith.mulf %4, %0 : vector<4x16x128xf32>
    %6 = arith.select %3, %0, %5 : vector<4x16x128xi1>, vector<4x16x128xf32>
    %c1_i32 = arith.constant 1 : i32
    %7 = tpu.dynamic_rotate %6 by %c1_i32 dim 2 : vector<4x16x128xf32>, i32 -> vector<4x16x128xf32>
    %c1_i32_3 = arith.constant 1 : i32
    %8 = vector.broadcast %c1_i32_3 : i32 to vector<1x1x128xi32>
    %9 = arith.cmpi sge, %1, %8 : vector<1x1x128xi32>
    %cst_4 = arith.constant 0.000000e+00 : f32
    %10 = vector.shape_cast %9 : vector<1x1x128xi1> to vector<1x1x128xi1>
    %11 = vector.broadcast %10 : vector<1x1x128xi1> to vector<4x16x128xi1>
    %12 = vector.broadcast %cst_4 : f32 to vector<4x16x128xf32>
    %13 = arith.select %11, %7, %12 : vector<4x16x128xi1>, vector<4x16x128xf32>
    %c127_i32 = arith.constant 127 : i32
    %14 = tpu.dynamic_rotate %6 by %c127_i32 dim 2 : vector<4x16x128xf32>, i32 -> vector<4x16x128xf32>
    %c127_i32_5 = arith.constant 127 : i32
    %15 = vector.broadcast %c127_i32_5 : i32 to vector<1x1x128xi32>
    %16 = arith.cmpi slt, %1, %15 : vector<1x1x128xi32>
    %cst_6 = arith.constant 0.000000e+00 : f32
    %17 = vector.shape_cast %16 : vector<1x1x128xi1> to vector<1x1x128xi1>
    %18 = vector.broadcast %17 : vector<1x1x128xi1> to vector<4x16x128xi1>
    %19 = vector.broadcast %cst_6 : f32 to vector<4x16x128xf32>
    %20 = arith.select %18, %14, %19 : vector<4x16x128xi1>, vector<4x16x128xf32>
    %21 = tpu.concatenate %13, %6, %20 in 1 : vector<4x16x128xf32>, vector<4x16x128xf32>, vector<4x16x128xf32> -> vector<4x48x128xf32>
    %c0_7 = arith.constant 0 : index
    %c0_8 = arith.constant 0 : index
    %22 = vector.load %arg2[%c0_7, %c0_8] : memref<16x48xf32, #tpu.memory_space<vmem>>, vector<16x48xf32>
    %23 = vector.shape_cast %22 : vector<16x48xf32> to vector<1x16x48xf32>
    %24 = vector.shape_cast %23 : vector<1x16x48xf32> to vector<1x16x48xf32>
    %25 = vector.broadcast %24 : vector<1x16x48xf32> to vector<4x16x48xf32>
    "tpu.trace_start"() <{level = 10 : i32, message = "nok,nkl->nol"}> : () -> ()
    %cst_9 = arith.constant dense<0.000000e+00> : vector<4x16x128xf32>
    %26 = tpu.matmul %25, %21, %cst_9 {dimension_numbers = #tpu.dot_dimension_numbers<[2], [1], [1], [2], [0, 0, 0, 1, 1, 2], [0], [0]>} : vector<4x16x48xf32>, vector<4x48x128xf32>, vector<4x16x128xf32> -> vector<4x16x128xf32>
    "tpu.trace_stop"() : () -> ()
    %c0_10 = arith.constant 0 : index
    %c0_11 = arith.constant 0 : index
    %27 = vector.load %arg3[%c0_10, %c0_11] : memref<16x1xf32, #tpu.memory_space<vmem>>, vector<16x1xf32>
    %28 = vector.shape_cast %27 : vector<16x1xf32> to vector<1x16x1xf32>
    %29 = vector.broadcast %28 : vector<1x16x1xf32> to vector<4x16x128xf32>
    %30 = arith.addf %26, %29 : vector<4x16x128xf32>
    %cst_12 = arith.constant 0.000000e+00 : f32
    %31 = vector.broadcast %cst_12 : f32 to vector<4x16x128xf32>
    %32 = arith.cmpf ogt, %30, %31 : vector<4x16x128xf32>
    %cst_13 = arith.constant 2.000000e-01 : f32
    %33 = vector.broadcast %cst_13 : f32 to vector<4x16x128xf32>
    %34 = arith.mulf %33, %30 : vector<4x16x128xf32>
    %35 = arith.select %32, %30, %34 : vector<4x16x128xi1>, vector<4x16x128xf32>
    %c3_i32 = arith.constant 3 : i32
    %36 = tpu.dynamic_rotate %35 by %c3_i32 dim 2 : vector<4x16x128xf32>, i32 -> vector<4x16x128xf32>
    %c3_i32_14 = arith.constant 3 : i32
    %37 = vector.broadcast %c3_i32_14 : i32 to vector<1x1x128xi32>
    %38 = arith.cmpi sge, %1, %37 : vector<1x1x128xi32>
    %cst_15 = arith.constant 0.000000e+00 : f32
    %39 = vector.shape_cast %38 : vector<1x1x128xi1> to vector<1x1x128xi1>
    %40 = vector.broadcast %39 : vector<1x1x128xi1> to vector<4x16x128xi1>
    %41 = vector.broadcast %cst_15 : f32 to vector<4x16x128xf32>
    %42 = arith.select %40, %36, %41 : vector<4x16x128xi1>, vector<4x16x128xf32>
    %c125_i32 = arith.constant 125 : i32
    %43 = tpu.dynamic_rotate %35 by %c125_i32 dim 2 : vector<4x16x128xf32>, i32 -> vector<4x16x128xf32>
    %c125_i32_16 = arith.constant 125 : i32
    %44 = vector.broadcast %c125_i32_16 : i32 to vector<1x1x128xi32>
    %45 = arith.cmpi slt, %1, %44 : vector<1x1x128xi32>
    %cst_17 = arith.constant 0.000000e+00 : f32
    %46 = vector.shape_cast %45 : vector<1x1x128xi1> to vector<1x1x128xi1>
    %47 = vector.broadcast %46 : vector<1x1x128xi1> to vector<4x16x128xi1>
    %48 = vector.broadcast %cst_17 : f32 to vector<4x16x128xf32>
    %49 = arith.select %47, %43, %48 : vector<4x16x128xi1>, vector<4x16x128xf32>
    %50 = tpu.concatenate %42, %35, %49 in 1 : vector<4x16x128xf32>, vector<4x16x128xf32>, vector<4x16x128xf32> -> vector<4x48x128xf32>
    %c0_18 = arith.constant 0 : index
    %c0_19 = arith.constant 0 : index
    %51 = vector.load %arg4[%c0_18, %c0_19] : memref<16x48xf32, #tpu.memory_space<vmem>>, vector<16x48xf32>
    %52 = vector.shape_cast %51 : vector<16x48xf32> to vector<1x16x48xf32>
    %53 = vector.shape_cast %52 : vector<1x16x48xf32> to vector<1x16x48xf32>
    %54 = vector.broadcast %53 : vector<1x16x48xf32> to vector<4x16x48xf32>
    "tpu.trace_start"() <{level = 10 : i32, message = "nok,nkl->nol"}> : () -> ()
    %cst_20 = arith.constant dense<0.000000e+00> : vector<4x16x128xf32>
    %55 = tpu.matmul %54, %50, %cst_20 {dimension_numbers = #tpu.dot_dimension_numbers<[2], [1], [1], [2], [0, 0, 0, 1, 1, 2], [0], [0]>} : vector<4x16x48xf32>, vector<4x48x128xf32>, vector<4x16x128xf32> -> vector<4x16x128xf32>
    "tpu.trace_stop"() : () -> ()
    %c0_21 = arith.constant 0 : index
    %c0_22 = arith.constant 0 : index
    %56 = vector.load %arg5[%c0_21, %c0_22] : memref<16x1xf32, #tpu.memory_space<vmem>>, vector<16x1xf32>
    %57 = vector.shape_cast %56 : vector<16x1xf32> to vector<1x16x1xf32>
    %58 = vector.broadcast %57 : vector<1x16x1xf32> to vector<4x16x128xf32>
    %59 = arith.addf %55, %58 : vector<4x16x128xf32>
    %60 = arith.addf %59, %0 : vector<4x16x128xf32>
    %c0_23 = arith.constant 0 : index
    %c0_24 = arith.constant 0 : index
    %c0_25 = arith.constant 0 : index
    %61 = vector.load %arg6[%c0_23, %c0_24, %c0_25] : memref<4x16x128xf32, #tpu.memory_space<vmem>>, vector<4x16x128xf32>
    tpu.vector_store %arg6[%c0_23, %c0_24, %c0_25], %60 {strides = array<i32>} : memref<4x16x128xf32, #tpu.memory_space<vmem>>, vector<4x16x128xf32>,
    return
  }
  func.func @transform_0(%arg0: i32) -> (i32, i32, i32) {
    %c0_i32 = arith.constant 0 : i32
    %c0_i32_0 = arith.constant 0 : i32
    %c0_i32_1 = arith.constant 0 : i32
    return %arg0, %c0_i32, %c0_i32_0 : i32, i32, i32
  }
  func.func @transform_1(%arg0: i32) -> (i32, i32) {
    %c0_i32 = arith.constant 0 : i32
    %c0_i32_0 = arith.constant 0 : i32
    %c0_i32_1 = arith.constant 0 : i32
    return %c0_i32, %c0_i32_0 : i32, i32
  }
  func.func @transform_2(%arg0: i32) -> (i32, i32) {
    %c0_i32 = arith.constant 0 : i32
    %c0_i32_0 = arith.constant 0 : i32
    %c0_i32_1 = arith.constant 0 : i32
    return %c0_i32, %c0_i32_0 : i32, i32
  }
  func.func @transform_3(%arg0: i32) -> (i32, i32) {
    %c0_i32 = arith.constant 0 : i32
    %c0_i32_0 = arith.constant 0 : i32
    %c0_i32_1 = arith.constant 0 : i32
    return %c0_i32, %c0_i32_0 : i32, i32
  }
  func.func @transform_4(%arg0: i32) -> (i32, i32) {
    %c0_i32 = arith.constant 0 : i32
    %c0_i32_0 = arith.constant 0 : i32
    %c0_i32_1 = arith.constant 0 : i32
    return %c0_i32, %c0_i32_0 : i32, i32
  }
  func.func @transform_5(%arg0: i32) -> (i32, i32, i32) {
    %c0_i32 = arith.constant 0 : i32
    %c0_i32_0 = arith.constant 0 : i32
    %c0_i32_1 = arith.constant 0 : i32
    return %arg0, %c0_i32, %c0_i32_0 : i32, i32, i32
  }
}

</mosaic_0001>

<llo_original>
// kernel: residual_layer.1
$region0: #{residual_layer.1}
  #allocation0 [shape = 'u32[]', space=smem, size = 0x4, offset = 0x4, fixed_abs, tag = 'smem constant byte address 0x4 - core index']
  #allocation1 [shape = 'u32[144,128]{1,0:T(1,128)}', space=vmem, size = 0x12000, scoped, tag = 'internal scratch']
  %s0 = inlined_call_operand.vmem [shape: f32[4,16,128], index: 0, kind: input, shape index: {}]
  %s1 = inlined_call_operand.vmem [shape: f32[16,48], index: 1, kind: input, shape index: {}]
  %s2 = inlined_call_operand.vmem [shape: f32[16,1], index: 2, kind: input, shape index: {}]
  %s3 = inlined_call_operand.vmem [shape: f32[16,48], index: 3, kind: input, shape index: {}]
  %s4 = inlined_call_operand.vmem [shape: f32[16,1], index: 4, kind: input, shape index: {}]
  %s5 = inlined_call_operand.hbm [shape: f32[4,16,128], index: 5, kind: output, shape index: {}]
  %s6 = sld [smem:[#allocation0]]
  $region30: #{residual_layer.1} parent=0
    _
  %s8 = ssub.s32 1, %s6
  %s9 = scalar_select 0, %s8, %s6
  $region1: #{residual_layer.1} parent=0
    #allocation2 [shape = 'u8[32768]{0}', space=vmem, size = 0x8000, scoped, tag = 'output window, operand 0, single buffered']
    #allocation3 [shape = 's32[1]{0}', space=sflag, size = 0x4, scoped, tag = 'scoped memory for residual_layer.1']
    %10 = vsyncpa [#allocation3], 0
    // Predicated region
    $region2: #{residual_layer.1} parent=1 // pred_check
      _
    $region3: #{residual_layer.1} parent=1 // pred_check_branch
      %12 = sbr.rel (0) target = $region5
    $region4: #{residual_layer.1} parent=1 // pred_region
      _
    $region5: #{residual_layer.1} parent=1 // pred_fallthru
      _
    // Predicated region
    $region6: #{residual_layer.1} parent=1 // pred_check
      _
    $region7: #{residual_layer.1} parent=1 // pred_check_branch
      %14 = sbr.rel (0) target = $region9
    $region8: #{residual_layer.1} parent=1 // pred_region
      _
    $region9: #{residual_layer.1} parent=1 // pred_fallthru
      _
    // Predicated region
    $region10: #{residual_layer.1} parent=1 // pred_check
      _
    $region11: #{residual_layer.1} parent=1 // pred_check_branch
      %16 = sbr.rel (0) target = $region13
    $region12: #{residual_layer.1} parent=1 // pred_region
      _
    $region13: #{residual_layer.1} parent=1 // pred_fallthru
      _
    // Predicated region
    $region14: #{residual_layer.1} parent=1 // pred_check
      _
    $region15: #{residual_layer.1} parent=1 // pred_check_branch
      %18 = sbr.rel (0) target = $region17
    $region16: #{residual_layer.1} parent=1 // pred_region
      _
    $region17: #{residual_layer.1} parent=1 // pred_fallthru
      _
    // Predicated region
    $region18: #{residual_layer.1} parent=1 // pred_check
      _
    $region19: #{residual_layer.1} parent=1 // pred_check_branch
      %20 = sbr.rel (0) target = $region21
    $region20: #{residual_layer.1} parent=1 // pred_region
      _
    $region21: #{residual_layer.1} parent=1 // pred_fallthru
      _
    %v21 = vld [vmem:[%s0] sm:$0xff]
    %v22 = vld [vmem:[%s0 + $0x8] sm:$0xff]
    %v23 = vld [vmem:[%s0 + $0x10] sm:$0xff]
    %v24 = vld [vmem:[%s0 + $0x18] sm:$0xff]
    %v25 = vld [vmem:[%s0 + $0x20] sm:$0xff]
    %v26 = vld [vmem:[%s0 + $0x28] sm:$0xff]
    %v27 = vld [vmem:[%s0 + $0x30] sm:$0xff]
    %v28 = vld [vmem:[%s0 + $0x38] sm:$0xff]
    %v29 = vlaneseq
    %v30 = vand.u32 %v29, 127
    %vm31 = vcmp.gt.f32.partialorder %v21, 0.0
    %vm32 = vcmp.gt.f32.partialorder %v22, 0.0
    %vm33 = vcmp.gt.f32.partialorder %v23, 0.0
    %vm34 = vcmp.gt.f32.partialorder %v24, 0.0
    %vm35 = vcmp.gt.f32.partialorder %v25, 0.0
    %vm36 = vcmp.gt.f32.partialorder %v26, 0.0
    %vm37 = vcmp.gt.f32.partialorder %v27, 0.0
    %vm38 = vcmp.gt.f32.partialorder %v28, 0.0
    %v39 = vmul.f32 %v21, 0.2
    %v40 = vmul.f32 %v22, 0.2
    %v41 = vmul.f32 %v23, 0.2
    %v42 = vmul.f32 %v24, 0.2
    %v43 = vmul.f32 %v25, 0.2
    %v44 = vmul.f32 %v26, 0.2
    %v45 = vmul.f32 %v27, 0.2
    %v46 = vmul.f32 %v28, 0.2
    %v47 = vsel %vm31, %v21, %v39
    %v48 = vsel %vm32, %v22, %v40
    %v49 = vsel %vm33, %v23, %v41
    %v50 = vsel %vm34, %v24, %v42
    %v51 = vsel %vm35, %v25, %v43
    %v52 = vsel %vm36, %v26, %v44
    %v53 = vsel %vm37, %v27, %v45
    %v54 = vsel %vm38, %v28, %v46
    %55 = vrot.lane.b32.xlu0 %v47, 1
    %v56 = vpop.permute.xlu0 %55
    %57 = vrot.lane.b32.xlu0 %v48, 1
    %v58 = vpop.permute.xlu0 %57
    %59 = vrot.lane.b32.xlu0 %v49, 1
    %v60 = vpop.permute.xlu0 %59
    %61 = vrot.lane.b32.xlu0 %v50, 1
    %v62 = vpop.permute.xlu0 %61
    %63 = vrot.lane.b32.xlu0 %v51, 1
    %v64 = vpop.permute.xlu0 %63
    %65 = vrot.lane.b32.xlu0 %v52, 1
    %v66 = vpop.permute.xlu0 %65
    %67 = vrot.lane.b32.xlu0 %v53, 1
    %v68 = vpop.permute.xlu0 %67
    %69 = vrot.lane.b32.xlu0 %v54, 1
    %v70 = vpop.permute.xlu0 %69
    %vm71 = vcmp.ge.s32.totalorder %v30, 1
    %v72 = vsel %vm71, 1, 0
    %vm73 = vcmp.eq.s32.totalorder %v72, 1
    %v74 = vsel %vm73, %v56, 0.0
    %v75 = vsel %vm73, %v58, 0.0
    %v76 = vsel %vm73, %v60, 0.0
    %v77 = vsel %vm73, %v62, 0.0
    %v78 = vsel %vm73, %v64, 0.0
    %v79 = vsel %vm73, %v66, 0.0
    %v80 = vsel %vm73, %v68, 0.0
    %v81 = vsel %vm73, %v70, 0.0
    %82 = vrot.lane.b32.xlu0 %v47, 127
    %v83 = vpop.permute.xlu0 %82
    %84 = vrot.lane.b32.xlu0 %v48, 127
    %v85 = vpop.permute.xlu0 %84
    %86 = vrot.lane.b32.xlu0 %v49, 127
    %v87 = vpop.permute.xlu0 %86
    %88 = vrot.lane.b32.xlu0 %v50, 127
    %v89 = vpop.permute.xlu0 %88
    %90 = vrot.lane.b32.xlu0 %v51, 127
    %v91 = vpop.permute.xlu0 %90
    %92 = vrot.lane.b32.xlu0 %v52, 127
    %v93 = vpop.permute.xlu0 %92
    %94 = vrot.lane.b32.xlu0 %v53, 127
    %v95 = vpop.permute.xlu0 %94
    %96 = vrot.lane.b32.xlu0 %v54, 127
    %v97 = vpop.permute.xlu0 %96
    %vm98 = vcmp.lt.s32.totalorder %v30, 127
    %v99 = vsel %vm98, 1, 0
    %vm100 = vcmp.eq.s32.totalorder %v99, 1
    %v101 = vsel %vm100, %v83, 0.0
    %v102 = vsel %vm100, %v85, 0.0
    %v103 = vsel %vm100, %v87, 0.0
    %v104 = vsel %vm100, %v89, 0.0
    %v105 = vsel %vm100, %v91, 0.0
    %v106 = vsel %vm100, %v93, 0.0
    %v107 = vsel %vm100, %v95, 0.0
    %v108 = vsel %vm100, %v97, 0.0
    %v109 = vld [vmem:[%s1] sm:$0xff]
    %v110 = vld [vmem:[%s1 + $0x8] sm:$0xff]
    %v111 = vld [vmem:[%s2] sm:$0xff]
    %v112 = vld [vmem:[%s2 + $0x8] sm:$0xff]
    %114 = vset.pattern.permute.xlu0 0
    %115 = vperm.xlu0 %114, %v111
    %v116 = vpop.permute.xlu0 %115
    %119 = vset.pattern.permute.xlu0 0
    %120 = vperm.xlu0 %119, %v112
    %v121 = vpop.permute.xlu0 %120
    %vm123 = vcmask 392192
    %v125 = vsel %vm123, %v109, 0
    %v128 = vsel %vm123, %v110, 0
    %130 = vmatprep.subr.mxu0 0.0
    %131 = vmatpush1.msra.mxu0 %v74
    %132 = vmatprep.subr.mxu0 0.0
    %133 = vmatpush1.msra.mxu0 %v75
    %134 = vmatprep.subr.mxu0 0.0
    %135 = vmatpush1.msra.mxu0 %v47
    %136 = vmatprep.subr.mxu0 0.0
    %137 = vmatpush1.msra.mxu0 %v48
    %138 = vmatprep.subr.mxu0 0.0
    %139 = vmatpush1.msra.mxu0 %v101
    %140 = vmatprep.subr.mxu0 0.0
    %141 = vmatpush1.msra.mxu0 %v102
    %142 = vmatprep.subr.mxu0 0.0
    %143 = vmatpush1.msra.mxu0 0.0
    %144 = vmatprep.subr.mxu0 0.0
    %145 = vmatpush1.msra.mxu0 0.0
    %146 = vmatprep.subr.mxu0 0.0
    %147 = vmatpush1.msra.mxu0 0.0
    %148 = vmatprep.subr.mxu0 0.0
    %149 = vmatpush1.msra.mxu0 0.0
    %150 = vmatprep.subr.mxu0 0.0
    %151 = vmatpush1.msra.mxu0 0.0
    %152 = vmatprep.subr.mxu0 0.0
    %153 = vmatpush1.msra.mxu0 0.0
    %154 = vmatprep.subr.mxu0 0.0
    %155 = vmatpush1.msra.mxu0 0.0
    %156 = vmatprep.subr.mxu0 0.0
    %157 = vmatpush1.msra.mxu0 0.0
    %158 = vmatprep.subr.mxu0 0.0
    %159 = vmatpush1.msra.mxu0 0.0
    %160 = vmatprep.subr.mxu0 0.0
    %161 = vmatpush1.msra.mxu0 0.0
    %162 = vmatprep.subr.mxu0 0.0
    %163 = vmatpush1.msra.mxu0 0.0
    %164 = vmatprep.subr.mxu0 0.0
    %165 = vmatpush1.msra.mxu0 0.0
    %166 = vmatprep.subr.mxu0 0.0
    %167 = vmatpush1.msra.mxu0 0.0
    %168 = vmatprep.subr.mxu0 0.0
    %169 = vmatpush1.msra.mxu0 0.0
    %170 = vmatprep.subr.mxu0 0.0
    %171 = vmatpush1.msra.mxu0 0.0
    %172 = vmatprep.subr.mxu0 0.0
    %173 = vmatpush1.msra.mxu0 0.0
    %174 = vmatprep.subr.mxu0 0.0
    %175 = vmatpush1.msra.mxu0 0.0
    %176 = vmatprep.subr.mxu0 0.0
    %177 = vmatpush1.msra.mxu0 0.0
    %178 = vmatprep.subr.mxu0 0.0
    %179 = vmatpush1.msra.mxu0 0.0
    %180 = vmatprep.subr.mxu0 0.0
    %181 = vmatpush1.msra.mxu0 0.0
    %182 = vmatprep.subr.mxu0 0.0
    %183 = vmatpush1.msra.mxu0 0.0
    %184 = vmatprep.subr.mxu0 0.0
    %185 = vmatpush1.msra.mxu0 0.0
    %186 = vmatprep.subr.mxu0 0.0
    %187 = vmatpush1.msra.mxu0 0.0
    %188 = vmatprep.subr.mxu0 0.0
    %189 = vmatpush1.msra.mxu0 0.0
    %190 = vmatprep.subr.mxu0 0.0
    %191 = vmatpush1.msra.mxu0 0.0
    %192 = vmatprep.subr.mxu0 0.0
    %193 = vmatpush1.msra.mxu0 0.0
    %194 = vmatprep.mubr.f32.mxu0 0.0
    %195 = vmatmul.mubr.f32.gmra.mrb[0].mxu0 %v125
    %v196 = vpop.f32.mrb[0].mxu0
    %v197 = vadd.f32 %v116, %v196
    %v198 = vpop.f32.mrb[0].mxu0
    %199 = vmatprep.mubr.f32.mxu0 0.0
    %200 = vmatmul.mubr.f32.gmra.mrb[0].mxu0 %v128
    %v201 = vpop.f32.mrb[0].mxu0
    %v202 = vadd.f32 %v121, %v201
    %v203 = vpop.f32.mrb[0].mxu0
    %204 = vdwg.mxu0
    %205 = vmatprep.subr.mxu0 0.0
    %206 = vmatpush1.msra.mxu0 %v76
    %207 = vmatprep.subr.mxu0 0.0
    %208 = vmatpush1.msra.mxu0 %v77
    %209 = vmatprep.subr.mxu0 0.0
    %210 = vmatpush1.msra.mxu0 %v49
    %211 = vmatprep.subr.mxu0 0.0
    %212 = vmatpush1.msra.mxu0 %v50
    %213 = vmatprep.subr.mxu0 0.0
    %214 = vmatpush1.msra.mxu0 %v103
    %215 = vmatprep.subr.mxu0 0.0
    %216 = vmatpush1.msra.mxu0 %v104
    %217 = vmatprep.subr.mxu0 0.0
    %218 = vmatpush1.msra.mxu0 0.0
    %219 = vmatprep.subr.mxu0 0.0
    %220 = vmatpush1.msra.mxu0 0.0
    %221 = vmatprep.subr.mxu0 0.0
    %222 = vmatpush1.msra.mxu0 0.0
    %223 = vmatprep.subr.mxu0 0.0
    %224 = vmatpush1.msra.mxu0 0.0
    %225 = vmatprep.subr.mxu0 0.0
    %226 = vmatpush1.msra.mxu0 0.0
    %227 = vmatprep.subr.mxu0 0.0
    %228 = vmatpush1.msra.mxu0 0.0
    %229 = vmatprep.subr.mxu0 0.0
    %230 = vmatpush1.msra.mxu0 0.0
    %231 = vmatprep.subr.mxu0 0.0
    %232 = vmatpush1.msra.mxu0 0.0
    %233 = vmatprep.subr.mxu0 0.0
    %234 = vmatpush1.msra.mxu0 0.0
    %235 = vmatprep.subr.mxu0 0.0
    %236 = vmatpush1.msra.mxu0 0.0
    %237 = vmatprep.subr.mxu0 0.0
    %238 = vmatpush1.msra.mxu0 0.0
    %239 = vmatprep.subr.mxu0 0.0
    %240 = vmatpush1.msra.mxu0 0.0
    %241 = vmatprep.subr.mxu0 0.0
    %242 = vmatpush1.msra.mxu0 0.0
    %243 = vmatprep.subr.mxu0 0.0
    %244 = vmatpush1.msra.mxu0 0.0
    %245 = vmatprep.subr.mxu0 0.0
    %246 = vmatpush1.msra.mxu0 0.0
    %247 = vmatprep.subr.mxu0 0.0
    %248 = vmatpush1.msra.mxu0 0.0
    %249 = vmatprep.subr.mxu0 0.0
    %250 = vmatpush1.msra.mxu0 0.0
    %251 = vmatprep.subr.mxu0 0.0
    %252 = vmatpush1.msra.mxu0 0.0
    %253 = vmatprep.subr.mxu0 0.0
    %254 = vmatpush1.msra.mxu0 0.0
    %255 = vmatprep.subr.mxu0 0.0
    %256 = vmatpush1.msra.mxu0 0.0
    %257 = vmatprep.subr.mxu0 0.0
    %258 = vmatpush1.msra.mxu0 0.0
    %259 = vmatprep.subr.mxu0 0.0
    %260 = vmatpush1.msra.mxu0 0.0
    %261 = vmatprep.subr.mxu0 0.0
    %262 = vmatpush1.msra.mxu0 0.0
    %263 = vmatprep.subr.mxu0 0.0
    %264 = vmatpush1.msra.mxu0 0.0
    %265 = vmatprep.subr.mxu0 0.0
    %266 = vmatpush1.msra.mxu0 0.0
    %267 = vmatprep.subr.mxu0 0.0
    %268 = vmatpush1.msra.mxu0 0.0
    %269 = vmatprep.mubr.f32.mxu0 0.0
    %270 = vmatmul.mubr.f32.gmra.mrb[0].mxu0 %v125
    %v271 = vpop.f32.mrb[0].mxu0
    %v272 = vadd.f32 %v116, %v271
    %v273 = vpop.f32.mrb[0].mxu0
    %274 = vmatprep.mubr.f32.mxu0 0.0
    %275 = vmatmul.mubr.f32.gmra.mrb[0].mxu0 %v128
    %v276 = vpop.f32.mrb[0].mxu0
    %v277 = vadd.f32 %v121, %v276
    %v278 = vpop.f32.mrb[0].mxu0
    %279 = vdwg.mxu0
    %280 = vmatprep.subr.mxu0 0.0
    %281 = vmatpush1.msra.mxu0 %v78
    %282 = vmatprep.subr.mxu0 0.0
    %283 = vmatpush1.msra.mxu0 %v79
    %284 = vmatprep.subr.mxu0 0.0
    %285 = vmatpush1.msra.mxu0 %v51
    %286 = vmatprep.subr.mxu0 0.0
    %287 = vmatpush1.msra.mxu0 %v52
    %288 = vmatprep.subr.mxu0 0.0
    %289 = vmatpush1.msra.mxu0 %v105
    %290 = vmatprep.subr.mxu0 0.0
    %291 = vmatpush1.msra.mxu0 %v106
    %292 = vmatprep.subr.mxu0 0.0
    %293 = vmatpush1.msra.mxu0 0.0
    %294 = vmatprep.subr.mxu0 0.0
    %295 = vmatpush1.msra.mxu0 0.0
    %296 = vmatprep.subr.mxu0 0.0
    %297 = vmatpush1.msra.mxu0 0.0
    %298 = vmatprep.subr.mxu0 0.0
    %299 = vmatpush1.msra.mxu0 0.0
    %300 = vmatprep.subr.mxu0 0.0
    %301 = vmatpush1.msra.mxu0 0.0
    %302 = vmatprep.subr.mxu0 0.0
    %303 = vmatpush1.msra.mxu0 0.0
    %304 = vmatprep.subr.mxu0 0.0
    %305 = vmatpush1.msra.mxu0 0.0
    %306 = vmatprep.subr.mxu0 0.0
    %307 = vmatpush1.msra.mxu0 0.0
    %308 = vmatprep.subr.mxu0 0.0
    %309 = vmatpush1.msra.mxu0 0.0
    %310 = vmatprep.subr.mxu0 0.0
    %311 = vmatpush1.msra.mxu0 0.0
    %312 = vmatprep.subr.mxu0 0.0
    %313 = vmatpush1.msra.mxu0 0.0
    %314 = vmatprep.subr.mxu0 0.0
    %315 = vmatpush1.msra.mxu0 0.0
    %316 = vmatprep.subr.mxu0 0.0
    %317 = vmatpush1.msra.mxu0 0.0
    %318 = vmatprep.subr.mxu0 0.0
    %319 = vmatpush1.msra.mxu0 0.0
    %320 = vmatprep.subr.mxu0 0.0
    %321 = vmatpush1.msra.mxu0 0.0
    %322 = vmatprep.subr.mxu0 0.0
    %323 = vmatpush1.msra.mxu0 0.0
    %324 = vmatprep.subr.mxu0 0.0
    %325 = vmatpush1.msra.mxu0 0.0
    %326 = vmatprep.subr.mxu0 0.0
    %327 = vmatpush1.msra.mxu0 0.0
    %328 = vmatprep.subr.mxu0 0.0
    %329 = vmatpush1.msra.mxu0 0.0
    %330 = vmatprep.subr.mxu0 0.0
    %331 = vmatpush1.msra.mxu0 0.0
    %332 = vmatprep.subr.mxu0 0.0
    %333 = vmatpush1.msra.mxu0 0.0
    %334 = vmatprep.subr.mxu0 0.0
    %335 = vmatpush1.msra.mxu0 0.0
    %336 = vmatprep.subr.mxu0 0.0
    %337 = vmatpush1.msra.mxu0 0.0
    %338 = vmatprep.subr.mxu0 0.0
    %339 = vmatpush1.msra.mxu0 0.0
    %340 = vmatprep.subr.mxu0 0.0
    %341 = vmatpush1.msra.mxu0 0.0
    %342 = vmatprep.subr.mxu0 0.0
    %343 = vmatpush1.msra.mxu0 0.0
    %344 = vmatprep.mubr.f32.mxu0 0.0
    %345 = vmatmul.mubr.f32.gmra.mrb[0].mxu0 %v125
    %v346 = vpop.f32.mrb[0].mxu0
    %v347 = vadd.f32 %v116, %v346
    %v348 = vpop.f32.mrb[0].mxu0
    %349 = vmatprep.mubr.f32.mxu0 0.0
    %350 = vmatmul.mubr.f32.gmra.mrb[0].mxu0 %v128
    %v351 = vpop.f32.mrb[0].mxu0
    %v352 = vadd.f32 %v121, %v351
    %v353 = vpop.f32.mrb[0].mxu0
    %354 = vdwg.mxu0
    %355 = vmatprep.subr.mxu0 0.0
    %356 = vmatpush1.msra.mxu0 %v80
    %357 = vmatprep.subr.mxu0 0.0
    %358 = vmatpush1.msra.mxu0 %v81
    %359 = vmatprep.subr.mxu0 0.0
    %360 = vmatpush1.msra.mxu0 %v53
    %361 = vmatprep.subr.mxu0 0.0
    %362 = vmatpush1.msra.mxu0 %v54
    %363 = vmatprep.subr.mxu0 0.0
    %364 = vmatpush1.msra.mxu0 %v107
    %365 = vmatprep.subr.mxu0 0.0
    %366 = vmatpush1.msra.mxu0 %v108
    %367 = vmatprep.subr.mxu0 0.0
    %368 = vmatpush1.msra.mxu0 0.0
    %369 = vmatprep.subr.mxu0 0.0
    %370 = vmatpush1.msra.mxu0 0.0
    %371 = vmatprep.subr.mxu0 0.0
    %372 = vmatpush1.msra.mxu0 0.0
    %373 = vmatprep.subr.mxu0 0.0
    %374 = vmatpush1.msra.mxu0 0.0
    %375 = vmatprep.subr.mxu0 0.0
    %376 = vmatpush1.msra.mxu0 0.0
    %377 = vmatprep.subr.mxu0 0.0
    %378 = vmatpush1.msra.mxu0 0.0
    %379 = vmatprep.subr.mxu0 0.0
    %380 = vmatpush1.msra.mxu0 0.0
    %381 = vmatprep.subr.mxu0 0.0
    %382 = vmatpush1.msra.mxu0 0.0
    %383 = vmatprep.subr.mxu0 0.0
    %384 = vmatpush1.msra.mxu0 0.0
    %385 = vmatprep.subr.mxu0 0.0
    %386 = vmatpush1.msra.mxu0 0.0
    %387 = vmatprep.subr.mxu0 0.0
    %388 = vmatpush1.msra.mxu0 0.0
    %389 = vmatprep.subr.mxu0 0.0
    %390 = vmatpush1.msra.mxu0 0.0
    %391 = vmatprep.subr.mxu0 0.0
    %392 = vmatpush1.msra.mxu0 0.0
    %393 = vmatprep.subr.mxu0 0.0
    %394 = vmatpush1.msra.mxu0 0.0
    %395 = vmatprep.subr.mxu0 0.0
    %396 = vmatpush1.msra.mxu0 0.0
    %397 = vmatprep.subr.mxu0 0.0
    %398 = vmatpush1.msra.mxu0 0.0
    %399 = vmatprep.subr.mxu0 0.0
    %400 = vmatpush1.msra.mxu0 0.0
    %401 = vmatprep.subr.mxu0 0.0
    %402 = vmatpush1.msra.mxu0 0.0
    %403 = vmatprep.subr.mxu0 0.0
    %404 = vmatpush1.msra.mxu0 0.0
    %405 = vmatprep.subr.mxu0 0.0
    %406 = vmatpush1.msra.mxu0 0.0
    %407 = vmatprep.subr.mxu0 0.0
    %408 = vmatpush1.msra.mxu0 0.0
    %409 = vmatprep.subr.mxu0 0.0
    %410 = vmatpush1.msra.mxu0 0.0
    %411 = vmatprep.subr.mxu0 0.0
    %412 = vmatpush1.msra.mxu0 0.0
    %413 = vmatprep.subr.mxu0 0.0
    %414 = vmatpush1.msra.mxu0 0.0
    %415 = vmatprep.subr.mxu0 0.0
    %416 = vmatpush1.msra.mxu0 0.0
    %417 = vmatprep.subr.mxu0 0.0
    %418 = vmatpush1.msra.mxu0 0.0
    %419 = vmatprep.mubr.f32.mxu0 0.0
    %420 = vmatmul.mubr.f32.gmra.mrb[0].mxu0 %v125
    %v421 = vpop.f32.mrb[0].mxu0
    %v422 = vadd.f32 %v116, %v421
    %v423 = vpop.f32.mrb[0].mxu0
    %424 = vmatprep.mubr.f32.mxu0 0.0
    %425 = vmatmul.mubr.f32.gmra.mrb[0].mxu0 %v128
    %v426 = vpop.f32.mrb[0].mxu0
    %v427 = vadd.f32 %v121, %v426
    %v428 = vpop.f32.mrb[0].mxu0
    %429 = vdwg.mxu0
    %vm430 = vcmp.gt.f32.partialorder %v197, 0.0
    %vm431 = vcmp.gt.f32.partialorder %v202, 0.0
    %vm432 = vcmp.gt.f32.partialorder %v272, 0.0
    %vm433 = vcmp.gt.f32.partialorder %v277, 0.0
    %vm434 = vcmp.gt.f32.partialorder %v347, 0.0
    %vm435 = vcmp.gt.f32.partialorder %v352, 0.0
    %vm436 = vcmp.gt.f32.partialorder %v422, 0.0
    %vm437 = vcmp.gt.f32.partialorder %v427, 0.0
    %v438 = vmul.f32 %v197, 0.2
    %v439 = vmul.f32 %v202, 0.2
    %v440 = vmul.f32 %v272, 0.2
    %v441 = vmul.f32 %v277, 0.2
    %v442 = vmul.f32 %v347, 0.2
    %v443 = vmul.f32 %v352, 0.2
    %v444 = vmul.f32 %v422, 0.2
    %v445 = vmul.f32 %v427, 0.2
    %v446 = vsel %vm430, %v197, %v438
    %v447 = vsel %vm431, %v202, %v439
    %v448 = vsel %vm432, %v272, %v440
    %v449 = vsel %vm433, %v277, %v441
    %v450 = vsel %vm434, %v347, %v442
    %v451 = vsel %vm435, %v352, %v443
    %v452 = vsel %vm436, %v422, %v444
    %v453 = vsel %vm437, %v427, %v445
    %454 = vrot.lane.b32.xlu0 %v446, 3
    %v455 = vpop.permute.xlu0 %454
    %456 = vrot.lane.b32.xlu0 %v447, 3
    %v457 = vpop.permute.xlu0 %456
    %458 = vrot.lane.b32.xlu0 %v448, 3
    %v459 = vpop.permute.xlu0 %458
    %460 = vrot.lane.b32.xlu0 %v449, 3
    %v461 = vpop.permute.xlu0 %460
    %462 = vrot.lane.b32.xlu0 %v450, 3
    %v463 = vpop.permute.xlu0 %462
    %464 = vrot.lane.b32.xlu0 %v451, 3
    %v465 = vpop.permute.xlu0 %464
    %466 = vrot.lane.b32.xlu0 %v452, 3
    %v467 = vpop.permute.xlu0 %466
    %468 = vrot.lane.b32.xlu0 %v453, 3
    %v469 = vpop.permute.xlu0 %468
    %vm470 = vcmp.ge.s32.totalorder %v30, 3
    %v471 = vsel %vm470, 1, 0
    %vm472 = vcmp.eq.s32.totalorder %v471, 1
    %v473 = vsel %vm472, %v455, 0.0
    %v474 = vsel %vm472, %v457, 0.0
    %v475 = vsel %vm472, %v459, 0.0
    %v476 = vsel %vm472, %v461, 0.0
    %v477 = vsel %vm472, %v463, 0.0
    %v478 = vsel %vm472, %v465, 0.0
    %v479 = vsel %vm472, %v467, 0.0
    %v480 = vsel %vm472, %v469, 0.0
    %481 = vrot.lane.b32.xlu0 %v446, 125
    %v482 = vpop.permute.xlu0 %481
    %483 = vrot.lane.b32.xlu0 %v447, 125
    %v484 = vpop.permute.xlu0 %483
    %485 = vrot.lane.b32.xlu0 %v448, 125
    %v486 = vpop.permute.xlu0 %485
    %487 = vrot.lane.b32.xlu0 %v449, 125
    %v488 = vpop.permute.xlu0 %487
    %489 = vrot.lane.b32.xlu0 %v450, 125
    %v490 = vpop.permute.xlu0 %489
    %491 = vrot.lane.b32.xlu0 %v451, 125
    %v492 = vpop.permute.xlu0 %491
    %493 = vrot.lane.b32.xlu0 %v452, 125
    %v494 = vpop.permute.xlu0 %493
    %495 = vrot.lane.b32.xlu0 %v453, 125
    %v496 = vpop.permute.xlu0 %495
    %vm497 = vcmp.lt.s32.totalorder %v30, 125
    %v498 = vsel %vm497, 1, 0
    %vm499 = vcmp.eq.s32.totalorder %v498, 1
    %v500 = vsel %vm499, %v482, 0.0
    %v501 = vsel %vm499, %v484, 0.0
    %v502 = vsel %vm499, %v486, 0.0
    %v503 = vsel %vm499, %v488, 0.0
    %v504 = vsel %vm499, %v490, 0.0
    %v505 = vsel %vm499, %v492, 0.0
    %v506 = vsel %vm499, %v494, 0.0
    %v507 = vsel %vm499, %v496, 0.0
    %v508 = vld [vmem:[%s3] sm:$0xff]
    %v509 = vld [vmem:[%s3 + $0x8] sm:$0xff]
    %v510 = vld [vmem:[%s4] sm:$0xff]
    %v511 = vld [vmem:[%s4 + $0x8] sm:$0xff]
    %513 = vset.pattern.permute.xlu0 0
    %514 = vperm.xlu0 %513, %v510
    %v515 = vpop.permute.xlu0 %514
    %518 = vset.pattern.permute.xlu0 0
    %519 = vperm.xlu0 %518, %v511
    %v520 = vpop.permute.xlu0 %519
    %v523 = vsel %vm123, %v508, 0
    %v526 = vsel %vm123, %v509, 0
    %528 = vmatprep.subr.mxu0 0.0
    %529 = vmatpush1.msra.mxu0 %v473
    %530 = vmatprep.subr.mxu0 0.0
    %531 = vmatpush1.msra.mxu0 %v474
    %532 = vmatprep.subr.mxu0 0.0
    %533 = vmatpush1.msra.mxu0 %v446
    %534 = vmatprep.subr.mxu0 0.0
    %535 = vmatpush1.msra.mxu0 %v447
    %536 = vmatprep.subr.mxu0 0.0
    %537 = vmatpush1.msra.mxu0 %v500
    %538 = vmatprep.subr.mxu0 0.0
    %539 = vmatpush1.msra.mxu0 %v501
    %540 = vmatprep.subr.mxu0 0.0
    %541 = vmatpush1.msra.mxu0 0.0
    %542 = vmatprep.subr.mxu0 0.0
    %543 = vmatpush1.msra.mxu0 0.0
    %544 = vmatprep.subr.mxu0 0.0
    %545 = vmatpush1.msra.mxu0 0.0
    %546 = vmatprep.subr.mxu0 0.0
    %547 = vmatpush1.msra.mxu0 0.0
    %548 = vmatprep.subr.mxu0 0.0
    %549 = vmatpush1.msra.mxu0 0.0
    %550 = vmatprep.subr.mxu0 0.0
    %551 = vmatpush1.msra.mxu0 0.0
    %552 = vmatprep.subr.mxu0 0.0
    %553 = vmatpush1.msra.mxu0 0.0
    %554 = vmatprep.subr.mxu0 0.0
    %555 = vmatpush1.msra.mxu0 0.0
    %556 = vmatprep.subr.mxu0 0.0
    %557 = vmatpush1.msra.mxu0 0.0
    %558 = vmatprep.subr.mxu0 0.0
    %559 = vmatpush1.msra.mxu0 0.0
    %560 = vmatprep.subr.mxu0 0.0
    %561 = vmatpush1.msra.mxu0 0.0
    %562 = vmatprep.subr.mxu0 0.0
    %563 = vmatpush1.msra.mxu0 0.0
    %564 = vmatprep.subr.mxu0 0.0
    %565 = vmatpush1.msra.mxu0 0.0
    %566 = vmatprep.subr.mxu0 0.0
    %567 = vmatpush1.msra.mxu0 0.0
    %568 = vmatprep.subr.mxu0 0.0
    %569 = vmatpush1.msra.mxu0 0.0
    %570 = vmatprep.subr.mxu0 0.0
    %571 = vmatpush1.msra.mxu0 0.0
    %572 = vmatprep.subr.mxu0 0.0
    %573 = vmatpush1.msra.mxu0 0.0
    %574 = vmatprep.subr.mxu0 0.0
    %575 = vmatpush1.msra.mxu0 0.0
    %576 = vmatprep.subr.mxu0 0.0
    %577 = vmatpush1.msra.mxu0 0.0
    %578 = vmatprep.subr.mxu0 0.0
    %579 = vmatpush1.msra.mxu0 0.0
    %580 = vmatprep.subr.mxu0 0.0
    %581 = vmatpush1.msra.mxu0 0.0
    %582 = vmatprep.subr.mxu0 0.0
    %583 = vmatpush1.msra.mxu0 0.0
    %584 = vmatprep.subr.mxu0 0.0
    %585 = vmatpush1.msra.mxu0 0.0
    %586 = vmatprep.subr.mxu0 0.0
    %587 = vmatpush1.msra.mxu0 0.0
    %588 = vmatprep.subr.mxu0 0.0
    %589 = vmatpush1.msra.mxu0 0.0
    %590 = vmatprep.subr.mxu0 0.0
    %591 = vmatpush1.msra.mxu0 0.0
    %592 = vmatprep.mubr.f32.mxu0 0.0
    %593 = vmatmul.mubr.f32.gmra.mrb[0].mxu0 %v523
    %v594 = vpop.f32.mrb[0].mxu0
    %v595 = vadd.f32 %v515, %v594
    %v596 = vpop.f32.mrb[0].mxu0
    %597 = vmatprep.mubr.f32.mxu0 0.0
    %598 = vmatmul.mubr.f32.gmra.mrb[0].mxu0 %v526
    %v599 = vpop.f32.mrb[0].mxu0
    %v600 = vadd.f32 %v520, %v599
    %v601 = vpop.f32.mrb[0].mxu0
    %602 = vdwg.mxu0
    %603 = vmatprep.subr.mxu0 0.0
    %604 = vmatpush1.msra.mxu0 %v475
    %605 = vmatprep.subr.mxu0 0.0
    %606 = vmatpush1.msra.mxu0 %v476
    %607 = vmatprep.subr.mxu0 0.0
    %608 = vmatpush1.msra.mxu0 %v448
    %609 = vmatprep.subr.mxu0 0.0
    %610 = vmatpush1.msra.mxu0 %v449
    %611 = vmatprep.subr.mxu0 0.0
    %612 = vmatpush1.msra.mxu0 %v502
    %613 = vmatprep.subr.mxu0 0.0
    %614 = vmatpush1.msra.mxu0 %v503
    %615 = vmatprep.subr.mxu0 0.0
    %616 = vmatpush1.msra.mxu0 0.0
    %617 = vmatprep.subr.mxu0 0.0
    %618 = vmatpush1.msra.mxu0 0.0
    %619 = vmatprep.subr.mxu0 0.0
    %620 = vmatpush1.msra.mxu0 0.0
    %621 = vmatprep.subr.mxu0 0.0
    %622 = vmatpush1.msra.mxu0 0.0
    %623 = vmatprep.subr.mxu0 0.0
    %624 = vmatpush1.msra.mxu0 0.0
    %625 = vmatprep.subr.mxu0 0.0
    %626 = vmatpush1.msra.mxu0 0.0
    %627 = vmatprep.subr.mxu0 0.0
    %628 = vmatpush1.msra.mxu0 0.0
    %629 = vmatprep.subr.mxu0 0.0
    %630 = vmatpush1.msra.mxu0 0.0
    %631 = vmatprep.subr.mxu0 0.0
    %632 = vmatpush1.msra.mxu0 0.0
    %633 = vmatprep.subr.mxu0 0.0
    %634 = vmatpush1.msra.mxu0 0.0
    %635 = vmatprep.subr.mxu0 0.0
    %636 = vmatpush1.msra.mxu0 0.0
    %637 = vmatprep.subr.mxu0 0.0
    %638 = vmatpush1.msra.mxu0 0.0
    %639 = vmatprep.subr.mxu0 0.0
    %640 = vmatpush1.msra.mxu0 0.0
    %641 = vmatprep.subr.mxu0 0.0
    %642 = vmatpush1.msra.mxu0 0.0
    %643 = vmatprep.subr.mxu0 0.0
    %644 = vmatpush1.msra.mxu0 0.0
    %645 = vmatprep.subr.mxu0 0.0
    %646 = vmatpush1.msra.mxu0 0.0
    %647 = vmatprep.subr.mxu0 0.0
    %648 = vmatpush1.msra.mxu0 0.0
    %649 = vmatprep.subr.mxu0 0.0
    %650 = vmatpush1.msra.mxu0 0.0
    %651 = vmatprep.subr.mxu0 0.0
    %652 = vmatpush1.msra.mxu0 0.0
    %653 = vmatprep.subr.mxu0 0.0
    %654 = vmatpush1.msra.mxu0 0.0
    %655 = vmatprep.subr.mxu0 0.0
    %656 = vmatpush1.msra.mxu0 0.0
    %657 = vmatprep.subr.mxu0 0.0
    %658 = vmatpush1.msra.mxu0 0.0
    %659 = vmatprep.subr.mxu0 0.0
    %660 = vmatpush1.msra.mxu0 0.0
    %661 = vmatprep.subr.mxu0 0.0
    %662 = vmatpush1.msra.mxu0 0.0
    %663 = vmatprep.subr.mxu0 0.0
    %664 = vmatpush1.msra.mxu0 0.0
    %665 = vmatprep.subr.mxu0 0.0
    %666 = vmatpush1.msra.mxu0 0.0
    %667 = vmatprep.mubr.f32.mxu0 0.0
    %668 = vmatmul.mubr.f32.gmra.mrb[0].mxu0 %v523
    %v669 = vpop.f32.mrb[0].mxu0
    %v670 = vadd.f32 %v515, %v669
    %v671 = vpop.f32.mrb[0].mxu0
    %672 = vmatprep.mubr.f32.mxu0 0.0
    %673 = vmatmul.mubr.f32.gmra.mrb[0].mxu0 %v526
    %v674 = vpop.f32.mrb[0].mxu0
    %v675 = vadd.f32 %v520, %v674
    %v676 = vpop.f32.mrb[0].mxu0
    %677 = vdwg.mxu0
    %678 = vmatprep.subr.mxu0 0.0
    %679 = vmatpush1.msra.mxu0 %v477
    %680 = vmatprep.subr.mxu0 0.0
    %681 = vmatpush1.msra.mxu0 %v478
    %682 = vmatprep.subr.mxu0 0.0
    %683 = vmatpush1.msra.mxu0 %v450
    %684 = vmatprep.subr.mxu0 0.0
    %685 = vmatpush1.msra.mxu0 %v451
    %686 = vmatprep.subr.mxu0 0.0
    %687 = vmatpush1.msra.mxu0 %v504
    %688 = vmatprep.subr.mxu0 0.0
    %689 = vmatpush1.msra.mxu0 %v505
    %690 = vmatprep.subr.mxu0 0.0
    %691 = vmatpush1.msra.mxu0 0.0
    %692 = vmatprep.subr.mxu0 0.0
    %693 = vmatpush1.msra.mxu0 0.0
    %694 = vmatprep.subr.mxu0 0.0
    %695 = vmatpush1.msra.mxu0 0.0
    %696 = vmatprep.subr.mxu0 0.0
    %697 = vmatpush1.msra.mxu0 0.0
    %698 = vmatprep.subr.mxu0 0.0
    %699 = vmatpush1.msra.mxu0 0.0
    %700 = vmatprep.subr.mxu0 0.0
    %701 = vmatpush1.msra.mxu0 0.0
    %702 = vmatprep.subr.mxu0 0.0
    %703 = vmatpush1.msra.mxu0 0.0
    %704 = vmatprep.subr.mxu0 0.0
    %705 = vmatpush1.msra.mxu0 0.0
    %706 = vmatprep.subr.mxu0 0.0
    %707 = vmatpush1.msra.mxu0 0.0
    %708 = vmatprep.subr.mxu0 0.0
    %709 = vmatpush1.msra.mxu0 0.0
    %710 = vmatprep.subr.mxu0 0.0
    %711 = vmatpush1.msra.mxu0 0.0
    %712 = vmatprep.subr.mxu0 0.0
    %713 = vmatpush1.msra.mxu0 0.0
    %714 = vmatprep.subr.mxu0 0.0
    %715 = vmatpush1.msra.mxu0 0.0
    %716 = vmatprep.subr.mxu0 0.0
    %717 = vmatpush1.msra.mxu0 0.0
    %718 = vmatprep.subr.mxu0 0.0
    %719 = vmatpush1.msra.mxu0 0.0
    %720 = vmatprep.subr.mxu0 0.0
    %721 = vmatpush1.msra.mxu0 0.0
    %722 = vmatprep.subr.mxu0 0.0
    %723 = vmatpush1.msra.mxu0 0.0
    %724 = vmatprep.subr.mxu0 0.0
    %725 = vmatpush1.msra.mxu0 0.0
    %726 = vmatprep.subr.mxu0 0.0
    %727 = vmatpush1.msra.mxu0 0.0
    %728 = vmatprep.subr.mxu0 0.0
    %729 = vmatpush1.msra.mxu0 0.0
    %730 = vmatprep.subr.mxu0 0.0
    %731 = vmatpush1.msra.mxu0 0.0
    %732 = vmatprep.subr.mxu0 0.0
    %733 = vmatpush1.msra.mxu0 0.0
    %734 = vmatprep.subr.mxu0 0.0
    %735 = vmatpush1.msra.mxu0 0.0
    %736 = vmatprep.subr.mxu0 0.0
    %737 = vmatpush1.msra.mxu0 0.0
    %738 = vmatprep.subr.mxu0 0.0
    %739 = vmatpush1.msra.mxu0 0.0
    %740 = vmatprep.subr.mxu0 0.0
    %741 = vmatpush1.msra.mxu0 0.0
    %742 = vmatprep.mubr.f32.mxu0 0.0
    %743 = vmatmul.mubr.f32.gmra.mrb[0].mxu0 %v523
    %v744 = vpop.f32.mrb[0].mxu0
    %v745 = vadd.f32 %v515, %v744
    %v746 = vpop.f32.mrb[0].mxu0
    %747 = vmatprep.mubr.f32.mxu0 0.0
    %748 = vmatmul.mubr.f32.gmra.mrb[0].mxu0 %v526
    %v749 = vpop.f32.mrb[0].mxu0
    %v750 = vadd.f32 %v520, %v749
    %v751 = vpop.f32.mrb[0].mxu0
    %752 = vdwg.mxu0
    %753 = vmatprep.subr.mxu0 0.0
    %754 = vmatpush1.msra.mxu0 %v479
    %755 = vmatprep.subr.mxu0 0.0
    %756 = vmatpush1.msra.mxu0 %v480
    %757 = vmatprep.subr.mxu0 0.0
    %758 = vmatpush1.msra.mxu0 %v452
    %759 = vmatprep.subr.mxu0 0.0
    %760 = vmatpush1.msra.mxu0 %v453
    %761 = vmatprep.subr.mxu0 0.0
    %762 = vmatpush1.msra.mxu0 %v506
    %763 = vmatprep.subr.mxu0 0.0
    %764 = vmatpush1.msra.mxu0 %v507
    %765 = vmatprep.subr.mxu0 0.0
    %766 = vmatpush1.msra.mxu0 0.0
    %767 = vmatprep.subr.mxu0 0.0
    %768 = vmatpush1.msra.mxu0 0.0
    %769 = vmatprep.subr.mxu0 0.0
    %770 = vmatpush1.msra.mxu0 0.0
    %771 = vmatprep.subr.mxu0 0.0
    %772 = vmatpush1.msra.mxu0 0.0
    %773 = vmatprep.subr.mxu0 0.0
    %774 = vmatpush1.msra.mxu0 0.0
    %775 = vmatprep.subr.mxu0 0.0
    %776 = vmatpush1.msra.mxu0 0.0
    %777 = vmatprep.subr.mxu0 0.0
    %778 = vmatpush1.msra.mxu0 0.0
    %779 = vmatprep.subr.mxu0 0.0
    %780 = vmatpush1.msra.mxu0 0.0
    %781 = vmatprep.subr.mxu0 0.0
    %782 = vmatpush1.msra.mxu0 0.0
    %783 = vmatprep.subr.mxu0 0.0
    %784 = vmatpush1.msra.mxu0 0.0
    %785 = vmatprep.subr.mxu0 0.0
    %786 = vmatpush1.msra.mxu0 0.0
    %787 = vmatprep.subr.mxu0 0.0
    %788 = vmatpush1.msra.mxu0 0.0
    %789 = vmatprep.subr.mxu0 0.0
    %790 = vmatpush1.msra.mxu0 0.0
    %791 = vmatprep.subr.mxu0 0.0
    %792 = vmatpush1.msra.mxu0 0.0
    %793 = vmatprep.subr.mxu0 0.0
    %794 = vmatpush1.msra.mxu0 0.0
    %795 = vmatprep.subr.mxu0 0.0
    %796 = vmatpush1.msra.mxu0 0.0
    %797 = vmatprep.subr.mxu0 0.0
    %798 = vmatpush1.msra.mxu0 0.0
    %799 = vmatprep.subr.mxu0 0.0
    %800 = vmatpush1.msra.mxu0 0.0
    %801 = vmatprep.subr.mxu0 0.0
    %802 = vmatpush1.msra.mxu0 0.0
    %803 = vmatprep.subr.mxu0 0.0
    %804 = vmatpush1.msra.mxu0 0.0
    %805 = vmatprep.subr.mxu0 0.0
    %806 = vmatpush1.msra.mxu0 0.0
    %807 = vmatprep.subr.mxu0 0.0
    %808 = vmatpush1.msra.mxu0 0.0
    %809 = vmatprep.subr.mxu0 0.0
    %810 = vmatpush1.msra.mxu0 0.0
    %811 = vmatprep.subr.mxu0 0.0
    %812 = vmatpush1.msra.mxu0 0.0
    %813 = vmatprep.subr.mxu0 0.0
    %814 = vmatpush1.msra.mxu0 0.0
    %815 = vmatprep.subr.mxu0 0.0
    %816 = vmatpush1.msra.mxu0 0.0
    %817 = vmatprep.mubr.f32.mxu0 0.0
    %818 = vmatmul.mubr.f32.gmra.mrb[0].mxu0 %v523
    %v819 = vpop.f32.mrb[0].mxu0
    %v820 = vadd.f32 %v515, %v819
    %v821 = vpop.f32.mrb[0].mxu0
    %822 = vmatprep.mubr.f32.mxu0 0.0
    %823 = vmatmul.mubr.f32.gmra.mrb[0].mxu0 %v526
    %v824 = vpop.f32.mrb[0].mxu0
    %v825 = vadd.f32 %v520, %v824
    %v826 = vpop.f32.mrb[0].mxu0
    %827 = vdwg.mxu0
    %v828 = vadd.f32 %v595, %v21
    %v829 = vadd.f32 %v600, %v22
    %v830 = vadd.f32 %v670, %v23
    %v831 = vadd.f32 %v675, %v24
    %v832 = vadd.f32 %v745, %v25
    %v833 = vadd.f32 %v750, %v26
    %v834 = vadd.f32 %v820, %v27
    %v835 = vadd.f32 %v825, %v28
    %836 = vst [vmem:[#allocation2] sm:$0xff] %v828
    %837 = vst [vmem:[#allocation2 + $0x8] sm:$0xff] %v829
    %838 = vst [vmem:[#allocation2 + $0x10] sm:$0xff] %v830
    %839 = vst [vmem:[#allocation2 + $0x18] sm:$0xff] %v831
    %840 = vst [vmem:[#allocation2 + $0x20] sm:$0xff] %v832
    %841 = vst [vmem:[#allocation2 + $0x28] sm:$0xff] %v833
    %842 = vst [vmem:[#allocation2 + $0x30] sm:$0xff] %v834
    %843 = vst [vmem:[#allocation2 + $0x38] sm:$0xff] %v835
    // Predicated region
    $region22: #{residual_layer.1} parent=1 // pred_check
      _
    $region23: #{residual_layer.1} parent=1 // pred_check_branch
      %845 = sbr.rel (0) target = $region25
    $region24: #{residual_layer.1} parent=1 // pred_region
      %s847 = ssub.s32 1024, 1024
      %848 = vsyncadd [#allocation3], %s847
      %s849 = sshll.u32 [#allocation2], 4
      %s850 = int_to_ptr.vmem [resolvable:$true] %s849
      %855 = dma.vmem_to_hbm [thread:$0]  %s850, 1024, %s5, [#allocation3], 128, 128, 8
    $region25: #{residual_layer.1} parent=1 // pred_fallthru
      _
    // Predicated region
    $region26: #{residual_layer.1} parent=1 // pred_check
      _
    $region27: #{residual_layer.1} parent=1 // pred_check_branch
      %857 = sbr.rel (0) target = $region29
    $region28: #{residual_layer.1} parent=1 // pred_region
      %858 = dma.done [#allocation3], 1024
    $region29: #{residual_layer.1} parent=1 // pred_fallthru
      _
    %859 = vsyncpa [#allocation3], 1

</llo_original>
